<compile_context>
chip_gen: v5e
topology: v5e:2x2
jax: 0.10.0
libtpu: 0.0.40
codegen_flags: <defaults>
</compile_context>

<pallas_src>
import jax
import jax.numpy as jnp
from jax.experimental import pallas as pl
from jax.experimental.pallas import tpu as pltpu


# --------------------------------------------------------------------------
# helpers
# --------------------------------------------------------------------------

def _vmem_capacity_bytes():
    try:
        info = pltpu.get_tpu_info()
        for attr in ("vmem_capacity_bytes", "vmem_size_bytes", "vmem_bytes"):
            v = getattr(info, attr, None)
            if v:
                return int(v)
    except Exception:
        pass
    return 64 << 20            # conservative default (v7x-class: 64 MiB physical)


def _scoped_vmem_limit():
    cap = _vmem_capacity_bytes()
    # v5e/v6e have 128 MiB VMEM -> allow ~96 MiB scoped; v7x has 64 MiB -> ~48 MiB.
    return (96 << 20) if cap >= (100 << 20) else (48 << 20)


def _lane_tile(m, bytes_per_col, budget, max_tile=8192):
    """Lane (last-dim) tile: the full dim if small, otherwise the largest multiple of 128
    whose (double-buffered) blocks fit inside `budget` bytes."""
    if m <= 512:
        return int(m)                      # block == full dim (exempt from /128 rule)
    cap = budget // max(int(bytes_per_col), 1)
    cap = max(128, (cap // 128) * 128)
    return int(min(max_tile, cap, (m // 128) * 128))


def _apply_activation(y, activation, slope):
    if activation == "relu":
        return jnp.maximum(y, 0.0)
    if activation == "leaky_relu":
        return jnp.where(y > 0, y, slope * y)
    if activation == "tanh":
        return jnp.tanh(y)
    if activation == "sigmoid":
        return jax.nn.sigmoid(y)
    return y                               # identity


def resolve_block_hparams(kernel_size=4, stride=2, padding=1, upsampling_factor=None):
    """Mirror of ConvTranspose2dBlock.__init__'s upsampling_factor logic."""
    if upsampling_factor:
        stride = upsampling_factor
        kernel_size = 2 * upsampling_factor
        padding = upsampling_factor // 2
    return kernel_size, stride, padding


# --------------------------------------------------------------------------
# Kernel A: per-input-pixel transposed-conv matmul (bf16 writeback)
# --------------------------------------------------------------------------

def _deconv_matmul_kernel(w_ref, x_ref, o_ref):
    # [Cout*K*K, Cin] @ [Cin, TL]; bf16 operands, f32 MXU accumulation, bf16 store.
    o_ref[...] = jnp.dot(w_ref[...], x_ref[...],
                         preferred_element_type=jnp.float32).astype(o_ref.dtype)


def deconv_matmul(w_mat, x_cm, *, vmem_limit):
    """w_mat: [Cout*K*K, Cin], x_cm: [Cin, N*H*W] -> [Cout*K*K, N*H*W] (bf16)."""
    R, Cin = w_mat.shape
    _, M = x_cm.shape

    # bf16 vregs pack 16 sublanes -> pad the tiny contraction dim to a multiple of 16.
    pad = (-Cin) % 16
    if pad:
        w_mat = jnp.pad(w_mat, ((0, 0), (0, pad)))
        x_cm = jnp.pad(x_cm, ((0, pad), (0, 0)))
        Cin += pad

    # byte budget: double-buffered bf16 input column block + bf16 output block,
    # minus the resident weight tile.
    budget = max(int(vmem_limit * 0.7) - 2 * R * Cin * 2, 4 << 20)
    tl = _lane_tile(M, 2 * (Cin * 2 + R * 2), budget)
    grid = (pl.cdiv(M, tl),)

    # TODO(synk): sweep pipeline_mode=pl.Buffered(3) on the streamed x block (v6e item).
    return pl.pallas_call(
        _deconv_matmul_kernel,
        grid=grid,
        in_specs=[
            pl.BlockSpec((R, Cin), lambda j: (0, 0)),    # weights: tiny, resident
            pl.BlockSpec((Cin, tl), lambda j: (0, j)),   # input columns: streamed
        ],
        out_specs=pl.BlockSpec((R, tl), lambda j: (0, j)),
        out_shape=jax.ShapeDtypeStruct((R, M), jnp.bfloat16),
        compiler_params=pltpu.CompilerParams(
            dimension_semantics=("parallel",),
            vmem_limit_bytes=vmem_limit,
        ),
        cost_estimate=pl.CostEstimate(
            flops=2 * R * Cin * M,
            transcendentals=0,
            bytes_accessed=R * Cin * 2 + Cin * M * 2 + R * M * 2,
        ),
    )(w_mat.astype(jnp.bfloat16), x_cm.astype(jnp.bfloat16))


# --------------------------------------------------------------------------
# Kernel B1: BatchNorm batch statistics (shifted single-pass accumulation)
# --------------------------------------------------------------------------

def _make_stats_kernel(s_valid, tile, n_tiles):
    has_partial = (s_valid % tile) != 0
    inv_first = 1.0 / float(tile)            # first tile is always full (tile <= s_valid)

    def kernel(x_ref, c_ref, s1_ref, s2_ref):
        n = pl.program_id(0)
        j = pl.program_id(1)
        x = x_ref[0]                          # (C, tile) f32

        @pl.when((n == 0) & (j == 0))
        def _init():
            # per-channel shift = mean of the first tile (kills E[x^2]-E[x]^2 cancellation)
            c_ref[...] = jnp.sum(x, axis=1, keepdims=True) * inv_first
            s1_ref[...] = jnp.zeros_like(s1_ref)
            s2_ref[...] = jnp.zeros_like(s2_ref)

        d = x - c_ref[...]
        if has_partial:
            last = j == (n_tiles - 1)

            @pl.when(jnp.logical_not(last))
            def _acc():
                s1_ref[...] += jnp.sum(d, axis=1, keepdims=True)
                s2_ref[...] += jnp.sum(d * d, axis=1, keepdims=True)

            @pl.when(last)            # mask only the (possibly) padded trailing tile
            def _acc_masked():
                cols = jax.lax.broadcasted_iota(jnp.int32, d.shape, 1) + j * tile
                dm = jnp.where(cols < s_valid, d, 0.0)
                s1_ref[...] += jnp.sum(dm, axis=1, keepdims=True)
                s2_ref[...] += jnp.sum(dm * dm, axis=1, keepdims=True)
        else:
            s1_ref[...] += jnp.sum(d, axis=1, keepdims=True)
            s2_ref[...] += jnp.sum(d * d, axis=1, keepdims=True)

    return kernel


def bn_stats(x_ncs, *, vmem_limit):
    """x_ncs: (N, C, S) f32 -> (shift, sum(x-shift), sum((x-shift)^2)), each (C, 1)."""
    N, C, S = x_ncs.shape
    budget = max(int(vmem_limit * 0.7), 4 << 20)
    ts = _lane_tile(S, 2 * C * 4, budget)
    n_tiles = -(-S // ts)

    c, s1, s2 = pl.pallas_call(
        _make_stats_kernel(S, ts, n_tiles),
        grid=(N, n_tiles),
        in_specs=[pl.BlockSpec((1, C, ts), lambda n, j: (n, 0, j))],
        out_specs=[
            pl.BlockSpec((C, 1), lambda n, j: (0, 0)),     # shift      (resident acc)
            pl.BlockSpec((C, 1), lambda n, j: (0, 0)),     # sum(d)     (resident acc)
            pl.BlockSpec((C, 1), lambda n, j: (0, 0)),     # sum(d^2)   (resident acc)
        ],
        out_shape=[
            jax.ShapeDtypeStruct((C, 1), jnp.float32),
            jax.ShapeDtypeStruct((C, 1), jnp.float32),
            jax.ShapeDtypeStruct((C, 1), jnp.float32),
        ],
        compiler_params=pltpu.CompilerParams(
            dimension_semantics=("arbitrary", "arbitrary"),   # sequential accumulation
            vmem_limit_bytes=vmem_limit,
        ),
        cost_estimate=pl.CostEstimate(
            flops=4 * N * C * S,
            transcendentals=0,
            bytes_accessed=N * C * S * 4 + 3 * C * 4,
        ),
    )(x_ncs)
    return c, s1, s2


# --------------------------------------------------------------------------
# Kernel B2: one-pass scale/shift + activation, NCHW-direct output
# --------------------------------------------------------------------------

def _make_scale_act_kernel(activation, slope):
    def kernel(x_ref, sc_ref, b_ref, o_ref):
        y = x_ref[...] * sc_ref[...] + b_ref[...]
        o_ref[...] = _apply_activation(y, activation, slope)
    return kernel


def scale_act(x_ncs, scale, bias, *, activation, slope, vmem_limit):
    """x_ncs: (N, C, S) f32; scale/bias: (C, 1).  Returns act(x*scale + bias), (N, C, S)."""
    N, C, S = x_ncs.shape
    budget = max(int(vmem_limit * 0.7), 4 << 20)
    ts = _lane_tile(S, 2 * (C * 4 + C * 4), budget)
    n_tiles = -(-S // ts)
    trans = N * C * S if activation in ("tanh", "sigmoid") else 0

    return pl.pallas_call(
        _make_scale_act_kernel(activation, slope),
        grid=(N, n_tiles),
        in_specs=[
            pl.BlockSpec((1, C, ts), lambda n, j: (n, 0, j)),
            pl.BlockSpec((C, 1), lambda n, j: (0, 0)),       # scale (resident)
            pl.BlockSpec((C, 1), lambda n, j: (0, 0)),       # bias  (resident)
        ],
        out_specs=pl.BlockSpec((1, C, ts), lambda n, j: (n, 0, j)),
        out_shape=jax.ShapeDtypeStruct((N, C, S), jnp.float32),
        compiler_params=pltpu.CompilerParams(
            dimension_semantics=("parallel", "parallel"),     # independent tiles (2 TCs)
            vmem_limit_bytes=vmem_limit,
        ),
        cost_estimate=pl.CostEstimate(
            flops=2 * N * C * S,
            transcendentals=trans,
            bytes_accessed=2 * N * C * S * 4 + 2 * C * 4,
        ),
    )(x_ncs, scale, bias)


# --------------------------------------------------------------------------
# ConvTranspose2dBlock forward
# --------------------------------------------------------------------------

def conv_transpose2d_block(x, weight, gamma=None, beta=None, *, stride=2, padding=1,
                           batch_norm=True, activation="relu", slope=0.2, eps=1e-5):
    """x: (N, Cin, H, W);  weight: (Cin, Cout, K, K)  [PyTorch ConvTranspose2d layout].
    Returns (N, Cout, OH, OW) with OH = (H-1)*stride - 2*padding + K."""
    N, Cin, H, W = x.shape
    w_cin, Cout, KH, KW = weight.shape
    assert Cin == w_cin and KH == KW
    K, s, p = KH, stride, padding
    vmem_limit = _scoped_vmem_limit()

    # ---- Kernel A: one lane-dense MXU matmul covering all K*K taps (bf16 writeback) ----
    x_cm = jnp.transpose(x, (1, 0, 2, 3)).reshape(Cin, N * H * W)           # [Cin, M]
    w_mat = jnp.transpose(weight, (1, 2, 3, 0)).reshape(Cout * K * K, Cin)  # [Cout*K*K, Cin]
    contrib = deconv_matmul(w_mat, x_cm, vmem_limit=vmem_limit)             # bf16
    contrib = contrib.reshape(Cout, K, K, N, H, W)

    # ---- phase-grouped col2im (no strided scatter-add) ----
    # full[co, n, q*s + r, q'*s + r'] = sum_{d,d'} contrib[co, r+d*s, r'+d'*s, n, q-d, q'-d']
    # Taps of one phase are summed in f32 with plain pad+add; the s*s phases are then
    # assembled with a single depth-to-space transpose/reshape and cropped.
    # TODO(synk): fold the tap-sum + assembly into Kernel A via halo-aware output tiling
    # so the K^2-expanded intermediate never round-trips HBM at all.
    Kd = -(-K // s)                                       # taps per phase (ceil(K/s))
    Hq, Wq = H + Kd - 1, W + Kd - 1
    phase_rows = []
    for r in range(s):
        row = []
        for rp in range(s):
            acc = jnp.zeros((Cout, N, Hq, Wq), jnp.float32)
            for d in range(Kd):
                kh = r + d * s
                if kh >= K:
                    continue
                for dp in range(Kd):
                    kw = rp + dp * s
                    if kw >= K:
                        continue
                    tap = contrib[:, kh, kw].astype(jnp.float32)          # (Cout, N, H, W)
                    acc = acc + jnp.pad(
                        tap, ((0, 0), (0, 0), (d, Kd - 1 - d), (dp, Kd - 1 - dp)))
            row.append(acc)
        phase_rows.append(jnp.stack(row, axis=0))
    stacked = jnp.stack(phase_rows, axis=0)               # (s, s, Cout, N, Hq, Wq)
    full = jnp.transpose(stacked, (3, 2, 4, 0, 5, 1)).reshape(N, Cout, Hq * s, Wq * s)

    OH = (H - 1) * s - 2 * p + K
    OW = (W - 1) * s - 2 * p + K
    out_ncs = full[:, :, p:p + OH, p:p + OW].reshape(N, Cout, OH * OW)     # NCHW-order view

    # ---- Kernel B: BatchNorm (training-mode batch stats) + activation, NCHW-direct ----
    # TODO(synk): BatchNorm2d running_mean/var buffer updates (momentum) are stateful and
    # not modeled; training-mode forward normalization matches PyTorch exactly.
    if batch_norm:
        if gamma is None:
            gamma = jnp.ones((Cout,), jnp.float32)
        if beta is None:
            beta = jnp.zeros((Cout,), jnp.float32)
        c, s1, s2 = bn_stats(out_ncs, vmem_limit=vmem_limit)
        cnt = float(N * OH * OW)
        mean = c + s1 / cnt
        var = jnp.maximum(s2 / cnt - (s1 / cnt) ** 2, 0.0)                 # biased batch var
        scale = gamma.reshape(Cout, 1).astype(jnp.float32) * jax.lax.rsqrt(var + eps)
        bias = beta.reshape(Cout, 1).astype(jnp.float32) - mean * scale
    else:
        scale = jnp.ones((Cout, 1), jnp.float32)
        bias = jnp.zeros((Cout, 1), jnp.float32)

    out_ncs = scale_act(out_ncs, scale, bias, activation=activation, slope=slope,
                        vmem_limit=vmem_limit)
    return out_ncs.reshape(N, Cout, OH, OW)                # free reshape, already NCHW


# --------------------------------------------------------------------------
# main
# --------------------------------------------------------------------------

if __name__ == "__main__":
    key = jax.random.PRNGKey(0)
    k_x, k_w = jax.random.split(key)

    N, Cin, Cout, H = 2, 4, 8, 16
    K, S, P = resolve_block_hparams()          # defaults: kernel=4, stride=2, padding=1

    x = jax.random.normal(k_x, (N, Cin, H, H), jnp.float32)
    weight = 0.1 * jax.random.normal(k_w, (Cin, Cout, K, K), jnp.float32)  # (Cin,Cout,K,K)
    gamma = jnp.ones((Cout,), jnp.float32)     # fresh nn.BatchNorm2d: weight=1, bias=0
    beta = jnp.zeros((Cout,), jnp.float32)

    fwd = jax.jit(lambda xx, ww, gg, bb: conv_transpose2d_block(
        xx, ww, gg, bb, stride=S, padding=P, batch_norm=True, activation="relu"))
    out = jax.block_until_ready(fwd(x, weight, gamma, beta))

    OH = (H - 1) * S - 2 * P + K
    assert out.shape == (N, Cout, OH, OH), out.shape

    # Pure-JAX reference: ConvTranspose2d == dilated conv with flipped, channel-swapped
    # weight, then training-mode BatchNorm (biased batch variance) and ReLU.
    w_ref = jnp.transpose(jnp.flip(weight, axis=(2, 3)), (1, 0, 2, 3))     # (Cout,Cin,K,K)
    ref = jax.lax.conv_general_dilated(
        x, w_ref, window_strides=(1, 1),
        padding=[(K - 1 - P, K - 1 - P)] * 2,
        lhs_dilation=(S, S),
        dimension_numbers=("NCHW", "OIHW", "NCHW"))
    mu = ref.mean(axis=(0, 2, 3), keepdims=True)
    var = ref.var(axis=(0, 2, 3), keepdims=True)
    ref = jnp.maximum((ref - mu) / jnp.sqrt(var + 1e-5)
                      * gamma.reshape(1, -1, 1, 1) + beta.reshape(1, -1, 1, 1), 0.0)
    err = jnp.abs(out - ref)
    max_err, mean_err = float(jnp.max(err)), float(jnp.mean(err))
    # bf16 matmul operands + bf16 contrib writeback vs f32 reference.
    assert max_err < 1e-1 and mean_err < 1e-2, (max_err, mean_err)

    print("KERNEL_OK")
</pallas_src>

<mosaic_0001>
module attributes {stable_mosaic.version = 11 : i64} {
  func.func @_deconv_matmul_kernel(%arg0: i32, %arg1: memref<128x16xbf16, #tpu.memory_space<vmem>>, %arg2: memref<16x512xbf16, #tpu.memory_space<vmem>>, %arg3: memref<128x512xbf16, #tpu.memory_space<vmem>>) attributes {dimension_semantics = [#tpu.dimension_semantics<parallel>], iteration_bounds = array<i64: 1>, scalar_prefetch = 0 : i64, scratch_operands = 0 : i64, tpu.core_type = #tpu.core_type<tc>, window_params = [{pipeline_mode = #tpu.pipeline_mode<synchronous>, transform_indices = @transform_0, window_bounds = array<i64: 128, 16>}, {transform_indices = @transform_1, window_bounds = array<i64: 16, 512>}, {transform_indices = @transform_2, window_bounds = array<i64: 128, 512>}]} {
    %c0 = arith.constant 0 : index
    %c0_0 = arith.constant 0 : index
    %0 = vector.load %arg1[%c0, %c0_0] : memref<128x16xbf16, #tpu.memory_space<vmem>>, vector<128x16xbf16>
    %c0_1 = arith.constant 0 : index
    %c0_2 = arith.constant 0 : index
    %1 = vector.load %arg2[%c0_1, %c0_2] : memref<16x512xbf16, #tpu.memory_space<vmem>>, vector<16x512xbf16>
    %cst = arith.constant dense<0.000000e+00> : vector<128x512xf32>
    %2 = tpu.matmul %0, %1, %cst {dimension_numbers = #tpu.dot_dimension_numbers<[1], [0], [0], [1], [0, 0, 1, 1], [], []>} : vector<128x16xbf16>, vector<16x512xbf16>, vector<128x512xf32> -> vector<128x512xf32>
    %3 = arith.truncf %2 : vector<128x512xf32> to vector<128x512xbf16>
    %c0_3 = arith.constant 0 : index
    %c0_4 = arith.constant 0 : index
    %4 = vector.load %arg3[%c0_3, %c0_4] : memref<128x512xbf16, #tpu.memory_space<vmem>>, vector<128x512xbf16>
    tpu.vector_store %arg3[%c0_3, %c0_4], %3 {strides = array<i32>} : memref<128x512xbf16, #tpu.memory_space<vmem>>, vector<128x512xbf16>,
    return
  }
  func.func @transform_0(%arg0: i32) -> (i32, i32) {
    %c0_i32 = arith.constant 0 : i32
    %c0_i32_0 = arith.constant 0 : i32
    %c0_i32_1 = arith.constant 0 : i32
    return %c0_i32, %c0_i32_0 : i32, i32
  }
  func.func @transform_1(%arg0: i32) -> (i32, i32) {
    %c0_i32 = arith.constant 0 : i32
    %c0_i32_0 = arith.constant 0 : i32
    return %c0_i32, %arg0 : i32, i32
  }
  func.func @transform_2(%arg0: i32) -> (i32, i32) {
    %c0_i32 = arith.constant 0 : i32
    %c0_i32_0 = arith.constant 0 : i32
    return %c0_i32, %arg0 : i32, i32
  }
}

module attributes {stable_mosaic.version = 11 : i64} {
  func.func @kernel(%arg0: i32, %arg1: i32, %arg2: memref<1x8x1024xf32, #tpu.memory_space<vmem>>, %arg3: memref<8x1xf32, #tpu.memory_space<vmem>>, %arg4: memref<8x1xf32, #tpu.memory_space<vmem>>, %arg5: memref<1x8x1024xf32, #tpu.memory_space<vmem>>) attributes {dimension_semantics = [#tpu.dimension_semantics<parallel>, #tpu.dimension_semantics<parallel>], iteration_bounds = array<i64: 2, 1>, scalar_prefetch = 0 : i64, scratch_operands = 0 : i64, tpu.core_type = #tpu.core_type<tc>, window_params = [{transform_indices = @transform_0, window_bounds = array<i64: 1, 8, 1024>}, {pipeline_mode = #tpu.pipeline_mode<synchronous>, transform_indices = @transform_1, window_bounds = array<i64: 8, 1>}, {pipeline_mode = #tpu.pipeline_mode<synchronous>, transform_indices = @transform_2, window_bounds = array<i64: 8, 1>}, {transform_indices = @transform_3, window_bounds = array<i64: 1, 8, 1024>}]} {
    %c0 = arith.constant 0 : index
    %c0_0 = arith.constant 0 : index
    %c0_1 = arith.constant 0 : index
    %0 = vector.load %arg2[%c0, %c0_0, %c0_1] : memref<1x8x1024xf32, #tpu.memory_space<vmem>>, vector<1x8x1024xf32>
    %c0_2 = arith.constant 0 : index
    %c0_3 = arith.constant 0 : index
    %1 = vector.load %arg3[%c0_2, %c0_3] : memref<8x1xf32, #tpu.memory_space<vmem>>, vector<8x1xf32>
    %2 = vector.shape_cast %1 : vector<8x1xf32> to vector<1x8x1xf32>
    %3 = vector.broadcast %2 : vector<1x8x1xf32> to vector<1x8x1024xf32>
    %4 = arith.mulf %0, %3 : vector<1x8x1024xf32>
    %c0_4 = arith.constant 0 : index
    %c0_5 = arith.constant 0 : index
    %5 = vector.load %arg4[%c0_4, %c0_5] : memref<8x1xf32, #tpu.memory_space<vmem>>, vector<8x1xf32>
    %6 = vector.shape_cast %5 : vector<8x1xf32> to vector<1x8x1xf32>
    %7 = vector.broadcast %6 : vector<1x8x1xf32> to vector<1x8x1024xf32>
    %8 = arith.addf %4, %7 : vector<1x8x1024xf32>
    %cst = arith.constant 0.000000e+00 : f32
    %9 = vector.broadcast %cst : f32 to vector<1x8x1024xf32>
    %10 = arith.maximumf %8, %9 : vector<1x8x1024xf32>
    %c0_6 = arith.constant 0 : index
    %c0_7 = arith.constant 0 : index
    %c0_8 = arith.constant 0 : index
    %11 = vector.load %arg5[%c0_6, %c0_7, %c0_8] : memref<1x8x1024xf32, #tpu.memory_space<vmem>>, vector<1x8x1024xf32>
    tpu.vector_store %arg5[%c0_6, %c0_7, %c0_8], %10 {strides = array<i32>} : memref<1x8x1024xf32, #tpu.memory_space<vmem>>, vector<1x8x1024xf32>,
    return
  }
  func.func @transform_0(%arg0: i32, %arg1: i32) -> (i32, i32, i32) {
    %c0_i32 = arith.constant 0 : i32
    %c0_i32_0 = arith.constant 0 : i32
    return %arg0, %c0_i32, %arg1 : i32, i32, i32
  }
  func.func @transform_1(%arg0: i32, %arg1: i32) -> (i32, i32) {
    %c0_i32 = arith.constant 0 : i32
    %c0_i32_0 = arith.constant 0 : i32
    %c0_i32_1 = arith.constant 0 : i32
    return %c0_i32, %c0_i32_0 : i32, i32
  }
  func.func @transform_2(%arg0: i32, %arg1: i32) -> (i32, i32) {
    %c0_i32 = arith.constant 0 : i32
    %c0_i32_0 = arith.constant 0 : i32
    %c0_i32_1 = arith.constant 0 : i32
    return %c0_i32, %c0_i32_0 : i32, i32
  }
  func.func @transform_3(%arg0: i32, %arg1: i32) -> (i32, i32, i32) {
    %c0_i32 = arith.constant 0 : i32
    %c0_i32_0 = arith.constant 0 : i32
    return %arg0, %c0_i32, %arg1 : i32, i32, i32
  }
}

module attributes {stable_mosaic.version = 11 : i64} {
  func.func @kernel(%arg0: i32, %arg1: i32, %arg2: memref<1x8x1024xf32, #tpu.memory_space<vmem>>, %arg3: memref<8x1xf32, #tpu.memory_space<vmem>>, %arg4: memref<8x1xf32, #tpu.memory_space<vmem>>, %arg5: memref<8x1xf32, #tpu.memory_space<vmem>>) attributes {dimension_semantics = [#tpu.dimension_semantics<arbitrary>, #tpu.dimension_semantics<arbitrary>], iteration_bounds = array<i64: 2, 1>, scalar_prefetch = 0 : i64, scratch_operands = 0 : i64, tpu.core_type = #tpu.core_type<tc>, window_params = [{transform_indices = @transform_0, window_bounds = array<i64: 1, 8, 1024>}, {pipeline_mode = #tpu.pipeline_mode<synchronous>, transform_indices = @transform_1, window_bounds = array<i64: 8, 1>}, {pipeline_mode = #tpu.pipeline_mode<synchronous>, transform_indices = @transform_2, window_bounds = array<i64: 8, 1>}, {pipeline_mode = #tpu.pipeline_mode<synchronous>, transform_indices = @transform_3, window_bounds = array<i64: 8, 1>}]} {
    %c0 = arith.constant 0 : index
    %c0_0 = arith.constant 0 : index
    %c0_1 = arith.constant 0 : index
    %0 = vector.load %arg2[%c0, %c0_0, %c0_1] : memref<1x8x1024xf32, #tpu.memory_space<vmem>>, vector<1x8x1024xf32>
    %1 = vector.shape_cast %0 : vector<1x8x1024xf32> to vector<8x1024xf32>
    %c0_i32 = arith.constant 0 : i32
    %2 = arith.cmpi eq, %arg0, %c0_i32 : i32
    %c0_i32_2 = arith.constant 0 : i32
    %3 = arith.cmpi eq, %arg1, %c0_i32_2 : i32
    %4 = arith.andi %2, %3 : i1
    %5 = arith.extui %4 : i1 to i32
    %c0_i32_3 = arith.constant 0 : i32
    %6 = arith.cmpi ne, %5, %c0_i32_3 : i32
    scf.if %6 {
      %cst_15 = arith.constant dense<0.000000e+00> : vector<8xf32>
      %21 = vector.multi_reduction <add>, %1, %cst_15 [1] : vector<8x1024xf32> to vector<8xf32>
      %22 = vector.shape_cast %21 : vector<8xf32> to vector<8x1xf32>
      %cst_16 = arith.constant 9.765625E-4 : f32
      %23 = vector.broadcast %cst_16 : f32 to vector<8x1xf32>
      %24 = arith.mulf %22, %23 : vector<8x1xf32>
      %c0_17 = arith.constant 0 : index
      %c0_18 = arith.constant 0 : index
      %25 = vector.load %arg3[%c0_17, %c0_18] : memref<8x1xf32, #tpu.memory_space<vmem>>, vector<8x1xf32>
      tpu.vector_store %arg3[%c0_17, %c0_18], %24 {strides = array<i32>} : memref<8x1xf32, #tpu.memory_space<vmem>>, vector<8x1xf32>,
      %cst_19 = arith.constant 0.000000e+00 : f32
      %26 = vector.broadcast %cst_19 : f32 to vector<8x1xf32>
      %c0_20 = arith.constant 0 : index
      %c0_21 = arith.constant 0 : index
      %27 = vector.load %arg4[%c0_20, %c0_21] : memref<8x1xf32, #tpu.memory_space<vmem>>, vector<8x1xf32>
      tpu.vector_store %arg4[%c0_20, %c0_21], %26 {strides = array<i32>} : memref<8x1xf32, #tpu.memory_space<vmem>>, vector<8x1xf32>,
      %cst_22 = arith.constant 0.000000e+00 : f32
      %28 = vector.broadcast %cst_22 : f32 to vector<8x1xf32>
      %c0_23 = arith.constant 0 : index
      %c0_24 = arith.constant 0 : index
      %29 = vector.load %arg5[%c0_23, %c0_24] : memref<8x1xf32, #tpu.memory_space<vmem>>, vector<8x1xf32>
      tpu.vector_store %arg5[%c0_23, %c0_24], %28 {strides = array<i32>} : memref<8x1xf32, #tpu.memory_space<vmem>>, vector<8x1xf32>,
    } else {
    }
    %c0_4 = arith.constant 0 : index
    %c0_5 = arith.constant 0 : index
    %7 = vector.load %arg3[%c0_4, %c0_5] : memref<8x1xf32, #tpu.memory_space<vmem>>, vector<8x1xf32>
    %8 = vector.broadcast %7 : vector<8x1xf32> to vector<8x1024xf32>
    %9 = arith.subf %1, %8 : vector<8x1024xf32>
    %c0_6 = arith.constant 0 : index
    %c0_7 = arith.constant 0 : index
    %10 = vector.load %arg4[%c0_6, %c0_7] : memref<8x1xf32, #tpu.memory_space<vmem>>, vector<8x1xf32>
    %cst = arith.constant dense<0.000000e+00> : vector<8xf32>
    %11 = vector.multi_reduction <add>, %9, %cst [1] : vector<8x1024xf32> to vector<8xf32>
    %12 = vector.shape_cast %11 : vector<8xf32> to vector<8x1xf32>
    %13 = arith.addf %10, %12 : vector<8x1xf32>
    %c0_8 = arith.constant 0 : index
    %c0_9 = arith.constant 0 : index
    %14 = vector.load %arg4[%c0_8, %c0_9] : memref<8x1xf32, #tpu.memory_space<vmem>>, vector<8x1xf32>
    tpu.vector_store %arg4[%c0_8, %c0_9], %13 {strides = array<i32>} : memref<8x1xf32, #tpu.memory_space<vmem>>, vector<8x1xf32>,
    %c0_10 = arith.constant 0 : index
    %c0_11 = arith.constant 0 : index
    %15 = vector.load %arg5[%c0_10, %c0_11] : memref<8x1xf32, #tpu.memory_space<vmem>>, vector<8x1xf32>
    %16 = arith.mulf %9, %9 : vector<8x1024xf32>
    %cst_12 = arith.constant dense<0.000000e+00> : vector<8xf32>
    %17 = vector.multi_reduction <add>, %16, %cst_12 [1] : vector<8x1024xf32> to vector<8xf32>
    %18 = vector.shape_cast %17 : vector<8xf32> to vector<8x1xf32>
    %19 = arith.addf %15, %18 : vector<8x1xf32>
    %c0_13 = arith.constant 0 : index
    %c0_14 = arith.constant 0 : index
    %20 = vector.load %arg5[%c0_13, %c0_14] : memref<8x1xf32, #tpu.memory_space<vmem>>, vector<8x1xf32>
    tpu.vector_store %arg5[%c0_13, %c0_14], %19 {strides = array<i32>} : memref<8x1xf32, #tpu.memory_space<vmem>>, vector<8x1xf32>,
    return
  }
  func.func @transform_0(%arg0: i32, %arg1: i32) -> (i32, i32, i32) {
    %c0_i32 = arith.constant 0 : i32
    %c0_i32_0 = arith.constant 0 : i32
    return %arg0, %c0_i32, %arg1 : i32, i32, i32
  }
  func.func @transform_1(%arg0: i32, %arg1: i32) -> (i32, i32) {
    %c0_i32 = arith.constant 0 : i32
    %c0_i32_0 = arith.constant 0 : i32
    %c0_i32_1 = arith.constant 0 : i32
    return %c0_i32, %c0_i32_0 : i32, i32
  }
  func.func @transform_2(%arg0: i32, %arg1: i32) -> (i32, i32) {
    %c0_i32 = arith.constant 0 : i32
    %c0_i32_0 = arith.constant 0 : i32
    %c0_i32_1 = arith.constant 0 : i32
    return %c0_i32, %c0_i32_0 : i32, i32
  }
  func.func @transform_3(%arg0: i32, %arg1: i32) -> (i32, i32) {
    %c0_i32 = arith.constant 0 : i32
    %c0_i32_0 = arith.constant 0 : i32
    %c0_i32_1 = arith.constant 0 : i32
    return %c0_i32, %c0_i32_0 : i32, i32
  }
}

</mosaic_0001>

<llo_original>
// kernel: _lambda_.3
$region0: #{_lambda_.3}
  #allocation0 [shape = 'u32[]', space=smem, size = 0x4, offset = 0x4, fixed_abs, tag = 'smem constant byte address 0x4 - core index']
  #allocation1 [shape = 'u32[72,128]{1,0:T(1,128)}', space=vmem, size = 0x9000, scoped, tag = 'internal scratch']
  %s0 = inlined_call_operand.vmem [shape: bf16[128,16], index: 0, kind: input, shape index: {}]
  %s1 = inlined_call_operand.vmem [shape: bf16[16,512], index: 1, kind: input, shape index: {}]
  %s2 = inlined_call_operand.vmem [shape: bf16[128,512], index: 2, kind: output, shape index: {}]
  %s3 = sld [smem:[#allocation0]]
  $region18: #{_lambda_.3} parent=0
    _
  %s5 = ssub.s32 1, %s3
  %s6 = scalar_select 0, %s5, %s3
  // Predicated region
  $region2: #{_lambda_.3} parent=0 // pred_check
    _
  $region3: #{_lambda_.3} parent=0 // pred_check_branch
    %8 = sbr.rel (0) target = $region5
  $region4: #{_lambda_.3} parent=0 // pred_region
    _
  $region5: #{_lambda_.3} parent=0 // pred_fallthru
    _
  // Predicated region
  $region6: #{_lambda_.3} parent=0 // pred_check
    _
  $region7: #{_lambda_.3} parent=0 // pred_check_branch
    %10 = sbr.rel (0) target = $region9
  $region8: #{_lambda_.3} parent=0 // pred_region
    _
  $region9: #{_lambda_.3} parent=0 // pred_fallthru
    _
  %v12 = vld [vmem:[%s0] sm:$0xf]
  %v13 = vld [vmem:[%s0 + $0x4] sm:$0xf]
  %v14 = vld [vmem:[%s0 + $0x8] sm:$0xf]
  %v15 = vld [vmem:[%s0 + $0xc] sm:$0xf]
  %v16 = vld [vmem:[%s0 + $0x10] sm:$0xf]
  %v17 = vld [vmem:[%s0 + $0x14] sm:$0xf]
  %v18 = vld [vmem:[%s0 + $0x18] sm:$0xf]
  %v19 = vld [vmem:[%s0 + $0x1c] sm:$0xf]
  %v20 = vld [vmem:[%s0 + $0x20] sm:$0xf]
  %v21 = vld [vmem:[%s0 + $0x24] sm:$0xf]
  %v22 = vld [vmem:[%s0 + $0x28] sm:$0xf]
  %v23 = vld [vmem:[%s0 + $0x2c] sm:$0xf]
  %v24 = vld [vmem:[%s0 + $0x30] sm:$0xf]
  %v25 = vld [vmem:[%s0 + $0x34] sm:$0xf]
  %v26 = vld [vmem:[%s0 + $0x38] sm:$0xf]
  %v27 = vld [vmem:[%s0 + $0x3c] sm:$0xf]
  %v28 = vld [vmem:[%s1] sm:$0xff]
  %v29 = vld [vmem:[%s1 + $0x8] sm:$0xff]
  %v30 = vld [vmem:[%s1 + $0x10] sm:$0xff]
  %v31 = vld [vmem:[%s1 + $0x18] sm:$0xff]
  %v48 = vunpack.c.l.b16 %v12
  %v49 = vunpack.c.l.b16 %v13
  %v50 = vunpack.c.l.b16 %v14
  %v51 = vunpack.c.l.b16 %v15
  %v52 = vunpack.c.l.b16 %v16
  %v53 = vunpack.c.l.b16 %v17
  %v54 = vunpack.c.l.b16 %v18
  %v55 = vunpack.c.l.b16 %v19
  %v56 = vunpack.c.l.b16 %v20
  %v57 = vunpack.c.l.b16 %v21
  %v58 = vunpack.c.l.b16 %v22
  %v59 = vunpack.c.l.b16 %v23
  %v60 = vunpack.c.l.b16 %v24
  %v61 = vunpack.c.l.b16 %v25
  %v62 = vunpack.c.l.b16 %v26
  %v63 = vunpack.c.l.b16 %v27
  %v64 = vpack.c.b16 %v49, %v48
  %v65 = vpack.c.b16 %v51, %v50
  %v66 = vpack.c.b16 %v53, %v52
  %v67 = vpack.c.b16 %v55, %v54
  %v68 = vpack.c.b16 %v57, %v56
  %v69 = vpack.c.b16 %v59, %v58
  %v70 = vpack.c.b16 %v61, %v60
  %v71 = vpack.c.b16 %v63, %v62
  %v76 = vunpack.c.l.b16 %v28
  %v77 = vunpack.c.h.b16 %v28
  %v78 = vunpack.c.l.b16 %v29
  %v79 = vunpack.c.h.b16 %v29
  %v80 = vunpack.c.l.b16 %v30
  %v81 = vunpack.c.h.b16 %v30
  %v82 = vunpack.c.l.b16 %v31
  %v83 = vunpack.c.h.b16 %v31
  %v84 = vpack.c.b16 %v80, %v76
  %v85 = vpack.c.b16 %v81, %v77
  %v86 = vpack.c.b16 %v82, %v78
  %v87 = vpack.c.b16 %v83, %v79
  %vm92 = vcmask 130048
  %v94 = vsel %vm92, %v64, 0
  %v97 = vsel %vm92, %v65, 0
  %v100 = vsel %vm92, %v66, 0
  %v103 = vsel %vm92, %v67, 0
  %v106 = vsel %vm92, %v68, 0
  %v109 = vsel %vm92, %v69, 0
  %v112 = vsel %vm92, %v70, 0
  %v115 = vsel %vm92, %v71, 0
  %117 = vmatpush.bf16.msra.mxu0 0
  %118 = vmatpush.bf16.msra.mxu0 0
  %119 = vmatpush.bf16.msra.mxu0 0
  %120 = vmatpush.bf16.msra.mxu0 0
  %121 = vmatpush.bf16.msra.mxu0 0
  %122 = vmatpush.bf16.msra.mxu0 0
  %123 = vmatpush.bf16.msra.mxu0 0
  %124 = vmatpush.bf16.msra.mxu0 %v84
  %125 = vmatmul.bf16.gmra.mxu0 %v94
  %v126 = vpop.f32.mrf.mxu0
  %v127 = vadd.f32 0.0, %v126
  %v128 = vpop.f32.mrf.mxu0
  %v129 = vadd.f32 0.0, %v128
  %130 = vmatmul.bf16.gmra.mxu0 %v97
  %v131 = vpop.f32.mrf.mxu0
  %v132 = vadd.f32 0.0, %v131
  %v133 = vpop.f32.mrf.mxu0
  %v134 = vadd.f32 0.0, %v133
  %135 = vmatmul.bf16.gmra.mxu0 %v100
  %v136 = vpop.f32.mrf.mxu0
  %v137 = vadd.f32 0.0, %v136
  %v138 = vpop.f32.mrf.mxu0
  %v139 = vadd.f32 0.0, %v138
  %140 = vmatmul.bf16.gmra.mxu0 %v103
  %v141 = vpop.f32.mrf.mxu0
  %v142 = vadd.f32 0.0, %v141
  %v143 = vpop.f32.mrf.mxu0
  %v144 = vadd.f32 0.0, %v143
  %145 = vmatmul.bf16.gmra.mxu0 %v106
  %v146 = vpop.f32.mrf.mxu0
  %v147 = vadd.f32 0.0, %v146
  %v148 = vpop.f32.mrf.mxu0
  %v149 = vadd.f32 0.0, %v148
  %150 = vmatmul.bf16.gmra.mxu0 %v109
  %v151 = vpop.f32.mrf.mxu0
  %v152 = vadd.f32 0.0, %v151
  %v153 = vpop.f32.mrf.mxu0
  %v154 = vadd.f32 0.0, %v153
  %155 = vmatmul.bf16.gmra.mxu0 %v112
  %v156 = vpop.f32.mrf.mxu0
  %v157 = vadd.f32 0.0, %v156
  %v158 = vpop.f32.mrf.mxu0
  %v159 = vadd.f32 0.0, %v158
  %160 = vmatmul.bf16.gmra.mxu0 %v115
  %v161 = vpop.f32.mrf.mxu0
  %v162 = vadd.f32 0.0, %v161
  %v163 = vpop.f32.mrf.mxu0
  %v164 = vadd.f32 0.0, %v163
  %165 = vdwg.mxu0
  %166 = vmatpush.bf16.msra.mxu0 0
  %167 = vmatpush.bf16.msra.mxu0 0
  %168 = vmatpush.bf16.msra.mxu0 0
  %169 = vmatpush.bf16.msra.mxu0 0
  %170 = vmatpush.bf16.msra.mxu0 0
  %171 = vmatpush.bf16.msra.mxu0 0
  %172 = vmatpush.bf16.msra.mxu0 0
  %173 = vmatpush.bf16.msra.mxu0 %v85
  %174 = vmatmul.bf16.gmra.mxu0 %v94
  %v175 = vpop.f32.mrf.mxu0
  %v176 = vadd.f32 0.0, %v175
  %v177 = vpop.f32.mrf.mxu0
  %v178 = vadd.f32 0.0, %v177
  %179 = vmatmul.bf16.gmra.mxu0 %v97
  %v180 = vpop.f32.mrf.mxu0
  %v181 = vadd.f32 0.0, %v180
  %v182 = vpop.f32.mrf.mxu0
  %v183 = vadd.f32 0.0, %v182
  %184 = vmatmul.bf16.gmra.mxu0 %v100
  %v185 = vpop.f32.mrf.mxu0
  %v186 = vadd.f32 0.0, %v185
  %v187 = vpop.f32.mrf.mxu0
  %v188 = vadd.f32 0.0, %v187
  %189 = vmatmul.bf16.gmra.mxu0 %v103
  %v190 = vpop.f32.mrf.mxu0
  %v191 = vadd.f32 0.0, %v190
  %v192 = vpop.f32.mrf.mxu0
  %v193 = vadd.f32 0.0, %v192
  %194 = vmatmul.bf16.gmra.mxu0 %v106
  %v195 = vpop.f32.mrf.mxu0
  %v196 = vadd.f32 0.0, %v195
  %v197 = vpop.f32.mrf.mxu0
  %v198 = vadd.f32 0.0, %v197
  %199 = vmatmul.bf16.gmra.mxu0 %v109
  %v200 = vpop.f32.mrf.mxu0
  %v201 = vadd.f32 0.0, %v200
  %v202 = vpop.f32.mrf.mxu0
  %v203 = vadd.f32 0.0, %v202
  %204 = vmatmul.bf16.gmra.mxu0 %v112
  %v205 = vpop.f32.mrf.mxu0
  %v206 = vadd.f32 0.0, %v205
  %v207 = vpop.f32.mrf.mxu0
  %v208 = vadd.f32 0.0, %v207
  %209 = vmatmul.bf16.gmra.mxu0 %v115
  %v210 = vpop.f32.mrf.mxu0
  %v211 = vadd.f32 0.0, %v210
  %v212 = vpop.f32.mrf.mxu0
  %v213 = vadd.f32 0.0, %v212
  %214 = vdwg.mxu0
  %215 = vmatpush.bf16.msra.mxu0 0
  %216 = vmatpush.bf16.msra.mxu0 0
  %217 = vmatpush.bf16.msra.mxu0 0
  %218 = vmatpush.bf16.msra.mxu0 0
  %219 = vmatpush.bf16.msra.mxu0 0
  %220 = vmatpush.bf16.msra.mxu0 0
  %221 = vmatpush.bf16.msra.mxu0 0
  %222 = vmatpush.bf16.msra.mxu0 %v86
  %223 = vmatmul.bf16.gmra.mxu0 %v94
  %v224 = vpop.f32.mrf.mxu0
  %v225 = vadd.f32 0.0, %v224
  %v226 = vpop.f32.mrf.mxu0
  %v227 = vadd.f32 0.0, %v226
  %228 = vmatmul.bf16.gmra.mxu0 %v97
  %v229 = vpop.f32.mrf.mxu0
  %v230 = vadd.f32 0.0, %v229
  %v231 = vpop.f32.mrf.mxu0
  %v232 = vadd.f32 0.0, %v231
  %233 = vmatmul.bf16.gmra.mxu0 %v100
  %v234 = vpop.f32.mrf.mxu0
  %v235 = vadd.f32 0.0, %v234
  %v236 = vpop.f32.mrf.mxu0
  %v237 = vadd.f32 0.0, %v236
  %238 = vmatmul.bf16.gmra.mxu0 %v103
  %v239 = vpop.f32.mrf.mxu0
  %v240 = vadd.f32 0.0, %v239
  %v241 = vpop.f32.mrf.mxu0
  %v242 = vadd.f32 0.0, %v241
  %243 = vmatmul.bf16.gmra.mxu0 %v106
  %v244 = vpop.f32.mrf.mxu0
  %v245 = vadd.f32 0.0, %v244
  %v246 = vpop.f32.mrf.mxu0
  %v247 = vadd.f32 0.0, %v246
  %248 = vmatmul.bf16.gmra.mxu0 %v109
  %v249 = vpop.f32.mrf.mxu0
  %v250 = vadd.f32 0.0, %v249
  %v251 = vpop.f32.mrf.mxu0
  %v252 = vadd.f32 0.0, %v251
  %253 = vmatmul.bf16.gmra.mxu0 %v112
  %v254 = vpop.f32.mrf.mxu0
  %v255 = vadd.f32 0.0, %v254
  %v256 = vpop.f32.mrf.mxu0
  %v257 = vadd.f32 0.0, %v256
  %258 = vmatmul.bf16.gmra.mxu0 %v115
  %v259 = vpop.f32.mrf.mxu0
  %v260 = vadd.f32 0.0, %v259
  %v261 = vpop.f32.mrf.mxu0
  %v262 = vadd.f32 0.0, %v261
  %263 = vdwg.mxu0
  %264 = vmatpush.bf16.msra.mxu0 0
  %265 = vmatpush.bf16.msra.mxu0 0
  %266 = vmatpush.bf16.msra.mxu0 0
  %267 = vmatpush.bf16.msra.mxu0 0
  %268 = vmatpush.bf16.msra.mxu0 0
  %269 = vmatpush.bf16.msra.mxu0 0
  %270 = vmatpush.bf16.msra.mxu0 0
  %271 = vmatpush.bf16.msra.mxu0 %v87
  %272 = vmatmul.bf16.gmra.mxu0 %v94
  %v273 = vpop.f32.mrf.mxu0
  %v274 = vadd.f32 0.0, %v273
  %v275 = vpop.f32.mrf.mxu0
  %v276 = vadd.f32 0.0, %v275
  %277 = vmatmul.bf16.gmra.mxu0 %v97
  %v278 = vpop.f32.mrf.mxu0
  %v279 = vadd.f32 0.0, %v278
  %v280 = vpop.f32.mrf.mxu0
  %v281 = vadd.f32 0.0, %v280
  %282 = vmatmul.bf16.gmra.mxu0 %v100
  %v283 = vpop.f32.mrf.mxu0
  %v284 = vadd.f32 0.0, %v283
  %v285 = vpop.f32.mrf.mxu0
  %v286 = vadd.f32 0.0, %v285
  %287 = vmatmul.bf16.gmra.mxu0 %v103
  %v288 = vpop.f32.mrf.mxu0
  %v289 = vadd.f32 0.0, %v288
  %v290 = vpop.f32.mrf.mxu0
  %v291 = vadd.f32 0.0, %v290
  %292 = vmatmul.bf16.gmra.mxu0 %v106
  %v293 = vpop.f32.mrf.mxu0
  %v294 = vadd.f32 0.0, %v293
  %v295 = vpop.f32.mrf.mxu0
  %v296 = vadd.f32 0.0, %v295
  %297 = vmatmul.bf16.gmra.mxu0 %v109
  %v298 = vpop.f32.mrf.mxu0
  %v299 = vadd.f32 0.0, %v298
  %v300 = vpop.f32.mrf.mxu0
  %v301 = vadd.f32 0.0, %v300
  %302 = vmatmul.bf16.gmra.mxu0 %v112
  %v303 = vpop.f32.mrf.mxu0
  %v304 = vadd.f32 0.0, %v303
  %v305 = vpop.f32.mrf.mxu0
  %v306 = vadd.f32 0.0, %v305
  %307 = vmatmul.bf16.gmra.mxu0 %v115
  %v308 = vpop.f32.mrf.mxu0
  %v309 = vadd.f32 0.0, %v308
  %v310 = vpop.f32.mrf.mxu0
  %v311 = vadd.f32 0.0, %v310
  %312 = vdwg.mxu0
  %v313 = vpack.c.bf16 %v176, %v127
  %v314 = vpack.c.bf16 %v274, %v225
  %v315 = vpack.c.bf16 %v178, %v129
  %v316 = vpack.c.bf16 %v276, %v227
  %v317 = vpack.c.bf16 %v181, %v132
  %v318 = vpack.c.bf16 %v279, %v230
  %v319 = vpack.c.bf16 %v183, %v134
  %v320 = vpack.c.bf16 %v281, %v232
  %v321 = vpack.c.bf16 %v186, %v137
  %v322 = vpack.c.bf16 %v284, %v235
  %v323 = vpack.c.bf16 %v188, %v139
  %v324 = vpack.c.bf16 %v286, %v237
  %v325 = vpack.c.bf16 %v191, %v142
  %v326 = vpack.c.bf16 %v289, %v240
  %v327 = vpack.c.bf16 %v193, %v144
  %v328 = vpack.c.bf16 %v291, %v242
  %v329 = vpack.c.bf16 %v196, %v147
  %v330 = vpack.c.bf16 %v294, %v245
  %v331 = vpack.c.bf16 %v198, %v149
  %v332 = vpack.c.bf16 %v296, %v247
  %v333 = vpack.c.bf16 %v201, %v152
  %v334 = vpack.c.bf16 %v299, %v250
  %v335 = vpack.c.bf16 %v203, %v154
  %v336 = vpack.c.bf16 %v301, %v252
  %v337 = vpack.c.bf16 %v206, %v157
  %v338 = vpack.c.bf16 %v304, %v255
  %v339 = vpack.c.bf16 %v208, %v159
  %v340 = vpack.c.bf16 %v306, %v257
  %v341 = vpack.c.bf16 %v211, %v162
  %v342 = vpack.c.bf16 %v309, %v260
  %v343 = vpack.c.bf16 %v213, %v164
  %v344 = vpack.c.bf16 %v311, %v262
  %345 = vst [vmem:[%s2] sm:$0xff] %v313
  %346 = vst [vmem:[%s2 + $0x8] sm:$0xff] %v314
  %347 = vst [vmem:[%s2 + $0x10] sm:$0xff] %v315
  %348 = vst [vmem:[%s2 + $0x18] sm:$0xff] %v316
  %349 = vst [vmem:[%s2 + $0x20] sm:$0xff] %v317
  %350 = vst [vmem:[%s2 + $0x28] sm:$0xff] %v318
  %351 = vst [vmem:[%s2 + $0x30] sm:$0xff] %v319
  %352 = vst [vmem:[%s2 + $0x38] sm:$0xff] %v320
  %353 = vst [vmem:[%s2 + $0x40] sm:$0xff] %v321
  %354 = vst [vmem:[%s2 + $0x48] sm:$0xff] %v322
  %355 = vst [vmem:[%s2 + $0x50] sm:$0xff] %v323
  %356 = vst [vmem:[%s2 + $0x58] sm:$0xff] %v324
  %357 = vst [vmem:[%s2 + $0x60] sm:$0xff] %v325
  %358 = vst [vmem:[%s2 + $0x68] sm:$0xff] %v326
  %359 = vst [vmem:[%s2 + $0x70] sm:$0xff] %v327
  %360 = vst [vmem:[%s2 + $0x78] sm:$0xff] %v328
  %361 = vst [vmem:[%s2 + $0x80] sm:$0xff] %v329
  %362 = vst [vmem:[%s2 + $0x88] sm:$0xff] %v330
  %363 = vst [vmem:[%s2 + $0x90] sm:$0xff] %v331
  %364 = vst [vmem:[%s2 + $0x98] sm:$0xff] %v332
  %365 = vst [vmem:[%s2 + $0xa0] sm:$0xff] %v333
  %366 = vst [vmem:[%s2 + $0xa8] sm:$0xff] %v334
  %367 = vst [vmem:[%s2 + $0xb0] sm:$0xff] %v335
  %368 = vst [vmem:[%s2 + $0xb8] sm:$0xff] %v336
  %369 = vst [vmem:[%s2 + $0xc0] sm:$0xff] %v337
  %370 = vst [vmem:[%s2 + $0xc8] sm:$0xff] %v338
  %371 = vst [vmem:[%s2 + $0xd0] sm:$0xff] %v339
  %372 = vst [vmem:[%s2 + $0xd8] sm:$0xff] %v340
  %373 = vst [vmem:[%s2 + $0xe0] sm:$0xff] %v341
  %374 = vst [vmem:[%s2 + $0xe8] sm:$0xff] %v342
  %375 = vst [vmem:[%s2 + $0xf0] sm:$0xff] %v343
  %376 = vst [vmem:[%s2 + $0xf8] sm:$0xff] %v344
  // Predicated region
  $region10: #{_lambda_.3} parent=0 // pred_check
    _
  $region11: #{_lambda_.3} parent=0 // pred_check_branch
    %378 = sbr.rel (0) target = $region13
  $region12: #{_lambda_.3} parent=0 // pred_region
    _
  $region13: #{_lambda_.3} parent=0 // pred_fallthru
    _
  // Predicated region
  $region14: #{_lambda_.3} parent=0 // pred_check
    _
  $region15: #{_lambda_.3} parent=0 // pred_check_branch
    %380 = sbr.rel (0) target = $region17
  $region16: #{_lambda_.3} parent=0 // pred_region
    _
  $region17: #{_lambda_.3} parent=0 // pred_fallthru
    _

// kernel: _lambda_.5
$region0: #{_lambda_.5}
  #allocation0 [shape = 'u32[]', space=smem, size = 0x4, offset = 0x4, fixed_abs, tag = 'smem constant byte address 0x4 - core index']
  #allocation1 [shape = 'u32[72,128]{1,0:T(1,128)}', space=vmem, size = 0x9000, scoped, tag = 'internal scratch']
  %s0 = inlined_call_operand.vmem [shape: f32[2,8,1024], index: 0, kind: input, shape index: {}]
  %s1 = inlined_call_operand.vmem [shape: f32[8,1], index: 1, kind: input, shape index: {}]
  %s2 = inlined_call_operand.vmem [shape: f32[8,1], index: 2, kind: input, shape index: {}]
  %s3 = inlined_call_operand.vmem [shape: f32[2,8,1024], index: 3, kind: output, shape index: {}]
  %s4 = sld [smem:[#allocation0]]
  $region45: #{_lambda_.5} parent=0
    _
  %s6 = ssub.s32 1, %s4
  %s7 = scalar_select 0, %s6, %s4
  loop: start=0, step=1, limit=4
  $region2: #{_lambda_.5} parent=0 // loop_pre_header
    _
  $region3: #{_lambda_.5} parent=0 // loop_header
    %s9 = sphi 0, %s13
    %p10 = scmp.ge.s32.totalorder %s9, 4
    %s16 = sphi 0, %s28
    %s17 = sphi 0, %s24
    %s18 = sphi 0, %s16
    %s19 = sphi 0, %s17
    %s20 = sphi 0, %s18
    %s21 = sphi 0, %s19
    %s33 = sphi 0, %s35
    %s36 = sphi 0, %s33
    %s37 = sphi 0, %s36
    %s53 = sphi 0, %s37
    %s57 = sphi 0, %s57
    %s59 = sphi 0, %s57
    %s60 = sphi 0, %s59
    %s74 = sphi 0, %s60
    %s78 = sphi 0, %s78
    %s80 = sphi 0, %s78
    %s81 = sphi 0, %s80
    %s95 = sphi 0, %s81
    %s103 = sphi 0, %s105
    %s106 = sphi 0, %s103
    %s107 = sphi 0, %s106
    %s123 = sphi 0, %s107
  $region4: #{_lambda_.5} parent=0 // loop_header_branch
    %12 = sbr.rel (%p10) target = $region8
  $region5: #{_lambda_.5} parent=0 // loop_body
    %s14 = ssub.s32 %s9, 1
    %s15 = ssub.s32 %s9, 2
    %s22 = sadd.s32 1, %s17
    %p23 = scmp.ge.s32.totalorder %s22, 1
    %s24 = scalar_select %p23, 0, %s22
    %s25 = sadd.s32 1, %s16
    %s26 = scalar_select %p23, %s25, %s16
    %p27 = scmp.ge.s32.totalorder %s26, 2
    %s28 = scalar_select %p27, 0, %s26
    %s29 = ssub.s32 %s16, %s28
    %s30 = ssub.s32 %s17, %s24
    %s31 = sor.u32 %s29, %s30
    %p32 = scmp.eq.s32.totalorder %s31, 0
    %s34 = sadd.s32 %s33, 1
    %s35 = scalar_select %p32, %s33, %s34
    %p38 = pneg %p32
    %p39 = scmp.eq.s32.totalorder %s9, 1
    %p40 = por %p38, %p39
    %p41 = scmp.ne.s32.totalorder %s33, %s36
    %p42 = scmp.eq.s32.totalorder %s9, 0
    %p43 = por %p41, %p42
    %p44 = scmp.ne.s32.totalorder %s33, %s36
    %p45 = scmp.eq.s32.totalorder %s14, 1
    %p46 = por %p44, %p45
    %p47 = scmp.ne.s32.totalorder %s36, %s37
    %p48 = scmp.eq.s32.totalorder %s14, 0
    %p49 = por %p47, %p48
    %p50 = scmp.ne.s32.totalorder %s36, %s37
    %p51 = scmp.eq.s32.totalorder %s15, 1
    %p52 = por %p50, %p51
    %p54 = scmp.ne.s32.totalorder %s37, %s53
    %p55 = scmp.eq.s32.totalorder %s15, 0
    %p56 = por %p54, %p55
    %s58 = sadd.s32 %s57, 1
    %p61 = scmp.eq.s32.totalorder %s9, 1
    %p62 = scmp.ne.s32.totalorder %s57, %s59
    %p63 = scmp.eq.s32.totalorder %s9, 0
    %p64 = por %p62, %p63
    %p65 = scmp.ne.s32.totalorder %s57, %s59
    %p66 = scmp.eq.s32.totalorder %s14, 1
    %p67 = por %p65, %p66
    %p68 = scmp.ne.s32.totalorder %s59, %s60
    %p69 = scmp.eq.s32.totalorder %s14, 0
    %p70 = por %p68, %p69
    %p71 = scmp.ne.s32.totalorder %s59, %s60
    %p72 = scmp.eq.s32.totalorder %s15, 1
    %p73 = por %p71, %p72
    %p75 = scmp.ne.s32.totalorder %s60, %s74
    %p76 = scmp.eq.s32.totalorder %s15, 0
    %p77 = por %p75, %p76
    %s79 = sadd.s32 %s78, 1
    %p82 = scmp.eq.s32.totalorder %s9, 1
    %p83 = scmp.ne.s32.totalorder %s78, %s80
    %p84 = scmp.eq.s32.totalorder %s9, 0
    %p85 = por %p83, %p84
    %p86 = scmp.ne.s32.totalorder %s78, %s80
    %p87 = scmp.eq.s32.totalorder %s14, 1
    %p88 = por %p86, %p87
    %p89 = scmp.ne.s32.totalorder %s80, %s81
    %p90 = scmp.eq.s32.totalorder %s14, 0
    %p91 = por %p89, %p90
    %p92 = scmp.ne.s32.totalorder %s80, %s81
    %p93 = scmp.eq.s32.totalorder %s15, 1
    %p94 = por %p92, %p93
    %p96 = scmp.ne.s32.totalorder %s81, %s95
    %p97 = scmp.eq.s32.totalorder %s15, 0
    %p98 = por %p96, %p97
    %s99 = ssub.s32 %s16, %s28
    %s100 = ssub.s32 %s17, %s24
    %s101 = sor.u32 %s99, %s100
    %p102 = scmp.eq.s32.totalorder %s101, 0
    %s104 = sadd.s32 %s103, 1
    %s105 = scalar_select %p102, %s103, %s104
    %p108 = pneg %p102
    %p109 = scmp.eq.s32.totalorder %s9, 1
    %p110 = por %p108, %p109
    %p111 = scmp.ne.s32.totalorder %s103, %s106
    %p112 = scmp.eq.s32.totalorder %s9, 0
    %p113 = por %p111, %p112
    %p114 = scmp.ne.s32.totalorder %s103, %s106
    %p115 = scmp.eq.s32.totalorder %s14, 1
    %p116 = por %p114, %p115
    %p117 = scmp.ne.s32.totalorder %s106, %s107
    %p118 = scmp.eq.s32.totalorder %s14, 0
    %p119 = por %p117, %p118
    %p120 = scmp.ne.s32.totalorder %s106, %s107
    %p121 = scmp.eq.s32.totalorder %s15, 1
    %p122 = por %p120, %p121
    %p124 = scmp.ne.s32.totalorder %s107, %s123
    %p125 = scmp.eq.s32.totalorder %s15, 0
    %p126 = por %p124, %p125
    %p127 = scmp.le.s32.totalorder 1, %s9
    %p128 = scmp.lt.s32.totalorder %s9, 3
    %p129 = pnand %p127, %p128
    %p130 = pneg %p129
    // Predicated region
    $region9: #{_lambda_.5} parent=5 // pred_check
      _
    $region10: #{_lambda_.5} parent=5 // pred_check_branch
      %132 = sbr.rel (%p129) target = $region12
    $region11: #{_lambda_.5} parent=5 // pred_region
      %s133 = ssub.s32 %s9, 1
      // Predicated region
      $region13: #{_lambda_.5} parent=11 // pred_check
        %p134 = pneg %p70
      $region14: #{_lambda_.5} parent=11 // pred_check_branch
        %136 = sbr.rel (%p134) target = $region16
      $region15: #{_lambda_.5} parent=11 // pred_region
        _
      $region16: #{_lambda_.5} parent=11 // pred_fallthru
        _
      // Predicated region
      $region17: #{_lambda_.5} parent=11 // pred_check
        %p137 = pneg %p91
      $region18: #{_lambda_.5} parent=11 // pred_check_branch
        %139 = sbr.rel (%p137) target = $region20
      $region19: #{_lambda_.5} parent=11 // pred_region
        _
      $region20: #{_lambda_.5} parent=11 // pred_fallthru
        _
    $region12: #{_lambda_.5} parent=5 // pred_fallthru
      _
    %p140 = scmp.lt.s32.totalorder %s9, 2
    // Predicated region
    $region21: #{_lambda_.5} parent=5 // pred_check
      %p141 = pneg %p140
    $region22: #{_lambda_.5} parent=5 // pred_check_branch
      %143 = sbr.rel (%p141) target = $region24
    $region23: #{_lambda_.5} parent=5 // pred_region
      // Predicated region
      $region25: #{_lambda_.5} parent=23 // pred_check
        %p144 = pneg %p43
      $region26: #{_lambda_.5} parent=23 // pred_check_branch
        %146 = sbr.rel (%p144) target = $region28
      $region27: #{_lambda_.5} parent=23 // pred_region
        %s147 = smul.u32 8, %s17
        %p148 = scmp.lt.s32.totalorder %s16, 1
        %s149 = scalar_select %p148, %s16, 1
        %p150 = scmp.lt.s32.totalorder %s147, 7
        %s151 = scalar_select %p150, %s147, 7
        %s152 = smul.addr %s149, 8
        %s153 = sadd.s32 %s151, %s152
        %s154 = smul.addr %s153, 8
        %s155 = scalar_lea.vmem %s0, %s154
        %s156 = smul.u32 8, %s17
      $region28: #{_lambda_.5} parent=23 // pred_fallthru
        _
    $region24: #{_lambda_.5} parent=5 // pred_fallthru
      _
    %p157 = scmp.le.s32.totalorder 1, %s9
    %p158 = scmp.lt.s32.totalorder %s9, 3
    %p159 = pnand %p157, %p158
    %p160 = pneg %p159
    // Predicated region
    $region29: #{_lambda_.5} parent=5 // pred_check
      _
    $region30: #{_lambda_.5} parent=5 // pred_check_branch
      %162 = sbr.rel (%p159) target = $region32
    $region31: #{_lambda_.5} parent=5 // pred_region
      %s163 = ssub.s32 %s9, 1
      %s164 = smul.u32 8, %s19
      %p165 = scmp.lt.s32.totalorder %s18, 1
      %s166 = scalar_select %p165, %s18, 1
      %p167 = scmp.lt.s32.totalorder %s164, 7
      %s168 = scalar_select %p167, %s164, 7
      %s169 = smul.addr %s166, 8
      %s170 = sadd.s32 %s168, %s169
      %s171 = smul.addr %s170, 8
      %s172 = scalar_lea.vmem %s0, %s171
      %p173 = pneg %p49
      %p174 = pneg %p46
      %p175 = pneg %p70
      %p176 = pneg %p67
      %p177 = pneg %p91
      %p178 = pneg %p88
      %p179 = pneg %p119
      %p180 = pneg %p116
      %s181 = smul.u32 8, %s19
      %p182 = scmp.lt.s32.totalorder %s18, 1
      %s183 = scalar_select %p182, %s18, 1
      %p184 = scmp.lt.s32.totalorder %s181, 7
      %s185 = scalar_select %p184, %s181, 7
      %s186 = smul.addr %s183, 8
      %s187 = sadd.s32 %s185, %s186
      %s188 = smul.addr %s187, 8
      %s189 = scalar_lea.vmem %s3, %s188
      %s190 = smul.u32 8, %s19
      %p191 = scmp.lt.s32.totalorder %s18, 1
      %s192 = scalar_select %p191, %s18, 1
      %p193 = scmp.lt.s32.totalorder %s190, 7
      %s194 = scalar_select %p193, %s190, 7
      %s195 = smul.addr %s192, 8
      %s196 = sadd.s32 %s194, %s195
      %s197 = smul.addr %s196, 8
      %s198 = scalar_lea.vmem %s0, %s197
      %s199 = smul.u32 8, %s19
      %s200 = smul.u32 8, %s19
      %p201 = scmp.lt.s32.totalorder %s18, 1
      %s202 = scalar_select %p201, %s18, 1
      %p203 = scmp.lt.s32.totalorder %s200, 7
      %s204 = scalar_select %p203, %s200, 7
      %s205 = smul.addr %s202, 8
      %s206 = sadd.s32 %s204, %s205
      %s207 = smul.addr %s206, 8
      %s208 = scalar_lea.vmem %s3, %s207
      %s209 = smul.u32 8, %s19
      %v210 = vld [vmem:[%s198] sm:$0xff]
      %v211 = vld [vmem:[%s198 + $0x8] sm:$0xff]
      %v212 = vld [vmem:[%s198 + $0x10] sm:$0xff]
      %v213 = vld [vmem:[%s198 + $0x18] sm:$0xff]
      %v214 = vld [vmem:[%s198 + $0x20] sm:$0xff]
      %v215 = vld [vmem:[%s198 + $0x28] sm:$0xff]
      %v216 = vld [vmem:[%s198 + $0x30] sm:$0xff]
      %v217 = vld [vmem:[%s198 + $0x38] sm:$0xff]
      %v218 = vld [vmem:[%s1] sm:$0xff]
      %220 = vset.pattern.permute.xlu0 0
      %221 = vperm.xlu0 %220, %v218
      %v222 = vpop.permute.xlu0 %221
      %v224 = vmul.f32 %v210, %v222
      %v225 = vmul.f32 %v211, %v222
      %v226 = vmul.f32 %v212, %v222
      %v227 = vmul.f32 %v213, %v222
      %v228 = vmul.f32 %v214, %v222
      %v229 = vmul.f32 %v215, %v222
      %v230 = vmul.f32 %v216, %v222
      %v231 = vmul.f32 %v217, %v222
      %v232 = vld [vmem:[%s2] sm:$0xff]
      %234 = vset.pattern.permute.xlu0 0
      %235 = vperm.xlu0 %234, %v232
      %v236 = vpop.permute.xlu0 %235
      %v238 = vadd.f32 %v224, %v236
      %v239 = vadd.f32 %v225, %v236
      %v240 = vadd.f32 %v226, %v236
      %v241 = vadd.f32 %v227, %v236
      %v242 = vadd.f32 %v228, %v236
      %v243 = vadd.f32 %v229, %v236
      %v244 = vadd.f32 %v230, %v236
      %v245 = vadd.f32 %v231, %v236
      %v246 = vmax.f32 %v238, 0.0
      %v247 = vmax.f32 %v239, 0.0
      %v248 = vmax.f32 %v240, 0.0
      %v249 = vmax.f32 %v241, 0.0
      %v250 = vmax.f32 %v242, 0.0
      %v251 = vmax.f32 %v243, 0.0
      %v252 = vmax.f32 %v244, 0.0
      %v253 = vmax.f32 %v245, 0.0
      %254 = vst [vmem:[%s208] sm:$0xff] %v246
      %255 = vst [vmem:[%s208 + $0x8] sm:$0xff] %v247
      %256 = vst [vmem:[%s208 + $0x10] sm:$0xff] %v248
      %257 = vst [vmem:[%s208 + $0x18] sm:$0xff] %v249
      %258 = vst [vmem:[%s208 + $0x20] sm:$0xff] %v250
      %259 = vst [vmem:[%s208 + $0x28] sm:$0xff] %v251
      %260 = vst [vmem:[%s208 + $0x30] sm:$0xff] %v252
      %261 = vst [vmem:[%s208 + $0x38] sm:$0xff] %v253
      %s262 = smul.u32 8, %s19
      %p263 = scmp.lt.s32.totalorder %s18, 1
      %s264 = scalar_select %p263, %s18, 1
      %p265 = scmp.lt.s32.totalorder %s262, 7
      %s266 = scalar_select %p265, %s262, 7
      %s267 = smul.addr %s264, 8
      %s268 = sadd.s32 %s266, %s267
      %s269 = smul.addr %s268, 8
      %s270 = scalar_lea.vmem %s3, %s269
      // Predicated region
      $region33: #{_lambda_.5} parent=31 // pred_check
        %p271 = pneg %p116
      $region34: #{_lambda_.5} parent=31 // pred_check_branch
        %273 = sbr.rel (%p271) target = $region36
      $region35: #{_lambda_.5} parent=31 // pred_region
        %s274 = smul.u32 8, %s19
      $region36: #{_lambda_.5} parent=31 // pred_fallthru
        _
    $region32: #{_lambda_.5} parent=5 // pred_fallthru
      _
    %p275 = scmp.le.s32.totalorder 2, %s9
    // Predicated region
    $region37: #{_lambda_.5} parent=5 // pred_check
      %p276 = pneg %p275
    $region38: #{_lambda_.5} parent=5 // pred_check_branch
      %278 = sbr.rel (%p276) target = $region40
    $region39: #{_lambda_.5} parent=5 // pred_region
      %s279 = ssub.s32 %s9, 2
      // Predicated region
      $region41: #{_lambda_.5} parent=39 // pred_check
        %p280 = pneg %p122
      $region42: #{_lambda_.5} parent=39 // pred_check_branch
        %282 = sbr.rel (%p280) target = $region44
      $region43: #{_lambda_.5} parent=39 // pred_region
        %s283 = smul.u32 8, %s21
        %p284 = scmp.lt.s32.totalorder %s20, 1
        %s285 = scalar_select %p284, %s20, 1
        %p286 = scmp.lt.s32.totalorder %s283, 7
        %s287 = scalar_select %p286, %s283, 7
        %s288 = smul.addr %s285, 8
        %s289 = sadd.s32 %s287, %s288
        %s290 = smul.addr %s289, 8
        %s291 = scalar_lea.vmem %s3, %s290
      $region44: #{_lambda_.5} parent=39 // pred_fallthru
        _
    $region40: #{_lambda_.5} parent=5 // pred_fallthru
      _
  $region6: #{_lambda_.5} parent=0 // loop_footer
    %s13 = sadd.s32 1, %s9
  $region7: #{_lambda_.5} parent=0 // loop_footer_branch
    %8 = sbr.rel target = $region3
  $region8: #{_lambda_.5} parent=0 // loop_exit
    _

// kernel: _lambda_.4
$region0: #{_lambda_.4}
  #allocation0 [shape = 'u32[]', space=smem, size = 0x4, offset = 0x4, fixed_abs, tag = 'smem constant byte address 0x4 - core index']
  #allocation1 [shape = 'u32[72,128]{1,0:T(1,128)}', space=vmem, size = 0x9000, scoped, tag = 'internal scratch']
  %s0 = inlined_call_operand.vmem [shape: f32[2,8,1024], index: 0, kind: input, shape index: {}]
  %s1 = inlined_call_operand.vmem [shape: f32[8,1], index: 1, kind: output, shape index: {0}]
  %s2 = inlined_call_operand.vmem [shape: f32[8,1], index: 2, kind: output, shape index: {1}]
  %s3 = inlined_call_operand.vmem [shape: f32[8,1], index: 3, kind: output, shape index: {2}]
  %4 = xla_tuple %s1, %s2, %s3
  %s5 = sld [smem:[#allocation0]]
  $region57: #{_lambda_.4} parent=0
    _
  %s7 = ssub.s32 1, %s5
  %s8 = scalar_select 0, %s7, %s5
  loop: start=0, step=1, limit=4
  $region2: #{_lambda_.4} parent=0 // loop_pre_header
    _
  $region3: #{_lambda_.4} parent=0 // loop_header
    %s10 = sphi 0, %s14
    %p11 = scmp.ge.s32.totalorder %s10, 4
    %s17 = sphi 0, %s29
    %s18 = sphi 0, %s25
    %s19 = sphi 0, %s17
    %s20 = sphi 0, %s18
    %s21 = sphi 0, %s19
    %s22 = sphi 0, %s20
    %s34 = sphi 0, %s36
    %s37 = sphi 0, %s34
    %s38 = sphi 0, %s37
    %s54 = sphi 0, %s38
    %s58 = sphi 0, %s58
    %s60 = sphi 0, %s58
    %s61 = sphi 0, %s60
    %s75 = sphi 0, %s61
    %s79 = sphi 0, %s79
    %s81 = sphi 0, %s79
    %s82 = sphi 0, %s81
    %s96 = sphi 0, %s82
    %s100 = sphi 0, %s100
    %s102 = sphi 0, %s100
    %s103 = sphi 0, %s102
    %s117 = sphi 0, %s103
  $region4: #{_lambda_.4} parent=0 // loop_header_branch
    %13 = sbr.rel (%p11) target = $region8
  $region5: #{_lambda_.4} parent=0 // loop_body
    %s15 = ssub.s32 %s10, 1
    %s16 = ssub.s32 %s10, 2
    %s23 = sadd.s32 1, %s18
    %p24 = scmp.ge.s32.totalorder %s23, 1
    %s25 = scalar_select %p24, 0, %s23
    %s26 = sadd.s32 1, %s17
    %s27 = scalar_select %p24, %s26, %s17
    %p28 = scmp.ge.s32.totalorder %s27, 2
    %s29 = scalar_select %p28, 0, %s27
    %s30 = ssub.s32 %s17, %s29
    %s31 = ssub.s32 %s18, %s25
    %s32 = sor.u32 %s30, %s31
    %p33 = scmp.eq.s32.totalorder %s32, 0
    %s35 = sadd.s32 %s34, 1
    %s36 = scalar_select %p33, %s34, %s35
    %p39 = pneg %p33
    %p40 = scmp.eq.s32.totalorder %s10, 1
    %p41 = por %p39, %p40
    %p42 = scmp.ne.s32.totalorder %s34, %s37
    %p43 = scmp.eq.s32.totalorder %s10, 0
    %p44 = por %p42, %p43
    %p45 = scmp.ne.s32.totalorder %s34, %s37
    %p46 = scmp.eq.s32.totalorder %s15, 1
    %p47 = por %p45, %p46
    %p48 = scmp.ne.s32.totalorder %s37, %s38
    %p49 = scmp.eq.s32.totalorder %s15, 0
    %p50 = por %p48, %p49
    %p51 = scmp.ne.s32.totalorder %s37, %s38
    %p52 = scmp.eq.s32.totalorder %s16, 1
    %p53 = por %p51, %p52
    %p55 = scmp.ne.s32.totalorder %s38, %s54
    %p56 = scmp.eq.s32.totalorder %s16, 0
    %p57 = por %p55, %p56
    %s59 = sadd.s32 %s58, 1
    %p62 = scmp.eq.s32.totalorder %s10, 1
    %p63 = scmp.ne.s32.totalorder %s58, %s60
    %p64 = scmp.eq.s32.totalorder %s10, 0
    %p65 = por %p63, %p64
    %p66 = scmp.ne.s32.totalorder %s58, %s60
    %p67 = scmp.eq.s32.totalorder %s15, 1
    %p68 = por %p66, %p67
    %p69 = scmp.ne.s32.totalorder %s60, %s61
    %p70 = scmp.eq.s32.totalorder %s15, 0
    %p71 = por %p69, %p70
    %p72 = scmp.ne.s32.totalorder %s60, %s61
    %p73 = scmp.eq.s32.totalorder %s16, 1
    %p74 = por %p72, %p73
    %p76 = scmp.ne.s32.totalorder %s61, %s75
    %p77 = scmp.eq.s32.totalorder %s16, 0
    %p78 = por %p76, %p77
    %s80 = sadd.s32 %s79, 1
    %p83 = scmp.eq.s32.totalorder %s10, 1
    %p84 = scmp.ne.s32.totalorder %s79, %s81
    %p85 = scmp.eq.s32.totalorder %s10, 0
    %p86 = por %p84, %p85
    %p87 = scmp.ne.s32.totalorder %s79, %s81
    %p88 = scmp.eq.s32.totalorder %s15, 1
    %p89 = por %p87, %p88
    %p90 = scmp.ne.s32.totalorder %s81, %s82
    %p91 = scmp.eq.s32.totalorder %s15, 0
    %p92 = por %p90, %p91
    %p93 = scmp.ne.s32.totalorder %s81, %s82
    %p94 = scmp.eq.s32.totalorder %s16, 1
    %p95 = por %p93, %p94
    %p97 = scmp.ne.s32.totalorder %s82, %s96
    %p98 = scmp.eq.s32.totalorder %s16, 0
    %p99 = por %p97, %p98
    %s101 = sadd.s32 %s100, 1
    %p104 = scmp.eq.s32.totalorder %s10, 1
    %p105 = scmp.ne.s32.totalorder %s100, %s102
    %p106 = scmp.eq.s32.totalorder %s10, 0
    %p107 = por %p105, %p106
    %p108 = scmp.ne.s32.totalorder %s100, %s102
    %p109 = scmp.eq.s32.totalorder %s15, 1
    %p110 = por %p108, %p109
    %p111 = scmp.ne.s32.totalorder %s102, %s103
    %p112 = scmp.eq.s32.totalorder %s15, 0
    %p113 = por %p111, %p112
    %p114 = scmp.ne.s32.totalorder %s102, %s103
    %p115 = scmp.eq.s32.totalorder %s16, 1
    %p116 = por %p114, %p115
    %p118 = scmp.ne.s32.totalorder %s103, %s117
    %p119 = scmp.eq.s32.totalorder %s16, 0
    %p120 = por %p118, %p119
    %p121 = scmp.le.s32.totalorder 1, %s10
    %p122 = scmp.lt.s32.totalorder %s10, 3
    %p123 = pnand %p121, %p122
    %p124 = pneg %p123
    // Predicated region
    $region9: #{_lambda_.4} parent=5 // pred_check
      _
    $region10: #{_lambda_.4} parent=5 // pred_check_branch
      %126 = sbr.rel (%p123) target = $region12
    $region11: #{_lambda_.4} parent=5 // pred_region
      %s127 = ssub.s32 %s10, 1
    $region12: #{_lambda_.4} parent=5 // pred_fallthru
      _
    %p128 = scmp.lt.s32.totalorder %s10, 2
    // Predicated region
    $region13: #{_lambda_.4} parent=5 // pred_check
      %p129 = pneg %p128
    $region14: #{_lambda_.4} parent=5 // pred_check_branch
      %131 = sbr.rel (%p129) target = $region16
    $region15: #{_lambda_.4} parent=5 // pred_region
      // Predicated region
      $region17: #{_lambda_.4} parent=15 // pred_check
        %p132 = pneg %p44
      $region18: #{_lambda_.4} parent=15 // pred_check_branch
        %134 = sbr.rel (%p132) target = $region20
      $region19: #{_lambda_.4} parent=15 // pred_region
        %s135 = smul.u32 8, %s18
        %p136 = scmp.lt.s32.totalorder %s17, 1
        %s137 = scalar_select %p136, %s17, 1
        %p138 = scmp.lt.s32.totalorder %s135, 7
        %s139 = scalar_select %p138, %s135, 7
        %s140 = smul.addr %s137, 8
        %s141 = sadd.s32 %s139, %s140
        %s142 = smul.addr %s141, 8
        %s143 = scalar_lea.vmem %s0, %s142
        %s144 = smul.u32 8, %s18
      $region20: #{_lambda_.4} parent=15 // pred_fallthru
        _
    $region16: #{_lambda_.4} parent=5 // pred_fallthru
      _
    %p145 = scmp.le.s32.totalorder 1, %s10
    %p146 = scmp.lt.s32.totalorder %s10, 3
    %p147 = pnand %p145, %p146
    %p148 = pneg %p147
    // Predicated region
    $region21: #{_lambda_.4} parent=5 // pred_check
      _
    $region22: #{_lambda_.4} parent=5 // pred_check_branch
      %150 = sbr.rel (%p147) target = $region24
    $region23: #{_lambda_.4} parent=5 // pred_region
      %s151 = ssub.s32 %s10, 1
      %s152 = smul.u32 8, %s20
      %p153 = scmp.lt.s32.totalorder %s19, 1
      %s154 = scalar_select %p153, %s19, 1
      %p155 = scmp.lt.s32.totalorder %s152, 7
      %s156 = scalar_select %p155, %s152, 7
      %s157 = smul.addr %s154, 8
      %s158 = sadd.s32 %s156, %s157
      %s159 = smul.addr %s158, 8
      %s160 = scalar_lea.vmem %s0, %s159
      %p161 = pneg %p50
      %p162 = pneg %p47
      %p163 = pneg %p71
      %p164 = pneg %p68
      %p165 = pneg %p92
      %p166 = pneg %p89
      %p167 = pneg %p113
      %p168 = pneg %p110
      %s169 = smul.u32 8, %s20
      %p170 = scmp.lt.s32.totalorder %s19, 1
      %s171 = scalar_select %p170, %s19, 1
      %p172 = scmp.lt.s32.totalorder %s169, 7
      %s173 = scalar_select %p172, %s169, 7
      %s174 = smul.addr %s171, 8
      %s175 = sadd.s32 %s173, %s174
      %s176 = smul.addr %s175, 8
      %s177 = scalar_lea.vmem %s0, %s176
      %s178 = smul.u32 8, %s20
      %v179 = vld [vmem:[%s177] sm:$0xff]
      %v180 = vld [vmem:[%s177 + $0x8] sm:$0xff]
      %v181 = vld [vmem:[%s177 + $0x10] sm:$0xff]
      %v182 = vld [vmem:[%s177 + $0x18] sm:$0xff]
      %v183 = vld [vmem:[%s177 + $0x20] sm:$0xff]
      %v184 = vld [vmem:[%s177 + $0x28] sm:$0xff]
      %v185 = vld [vmem:[%s177 + $0x30] sm:$0xff]
      %v186 = vld [vmem:[%s177 + $0x38] sm:$0xff]
      %p187 = scmp.eq.s32.totalorder %s19, 0
      %p188 = scmp.eq.s32.totalorder %s20, 0
      %p189 = pnand %p187, %p188
      %p190 = pneg %p189
      // Predicated region
      $region25: #{_lambda_.4} parent=23 // pred_check
        _
      $region26: #{_lambda_.4} parent=23 // pred_check_branch
        %192 = sbr.rel (%p189) target = $region28
      $region27: #{_lambda_.4} parent=23 // pred_region
        %v193 = vadd.f32 %v179, %v180
        %v194 = vadd.f32 %v193, %v181
        %v195 = vadd.f32 %v194, %v182
        %v196 = vadd.f32 %v195, %v183
        %v197 = vadd.f32 %v196, %v184
        %v198 = vadd.f32 %v197, %v185
        %v199 = vadd.f32 %v198, %v186
        %200 = vadd.xlane.f32.xlu0 %v199
        %v201 = vpop.xlane.xlu0 %200
        %v202 = vmul.f32 %v201, 0.0009765625
        %vm203 = vcmask 7168
        %204 = vst.msk [vmem:[%s1] sm:$0xff] %vm203, %v202
        %205 = vst.msk [vmem:[%s2] sm:$0xff] %vm203, 0.0
        %206 = vst.msk [vmem:[%s3] sm:$0xff] %vm203, 0.0
      $region28: #{_lambda_.4} parent=23 // pred_fallthru
        _
      %v207 = vld [vmem:[%s1] sm:$0xff]
      %209 = vset.pattern.permute.xlu0 0
      %210 = vperm.xlu0 %209, %v207
      %v211 = vpop.permute.xlu0 %210
      %v213 = vsub.f32 %v179, %v211
      %v214 = vsub.f32 %v180, %v211
      %v215 = vsub.f32 %v181, %v211
      %v216 = vsub.f32 %v182, %v211
      %v217 = vsub.f32 %v183, %v211
      %v218 = vsub.f32 %v184, %v211
      %v219 = vsub.f32 %v185, %v211
      %v220 = vsub.f32 %v186, %v211
      %v221 = vld [vmem:[%s2] sm:$0xff]
      %v222 = vadd.f32 %v213, %v214
      %v223 = vadd.f32 %v222, %v215
      %v224 = vadd.f32 %v223, %v216
      %v225 = vadd.f32 %v224, %v217
      %v226 = vadd.f32 %v225, %v218
      %v227 = vadd.f32 %v226, %v219
      %v228 = vadd.f32 %v227, %v220
      %229 = vadd.xlane.f32.xlu0 %v228
      %v230 = vpop.xlane.xlu0 %229
      %v231 = vadd.f32 %v221, %v230
      %vm232 = vcmask 7168
      %233 = vst.msk [vmem:[%s2] sm:$0xff] %vm232, %v231
      %v234 = vld [vmem:[%s3] sm:$0xff]
      %v235 = vmul.f32 %v213, %v213
      %v236 = vmul.f32 %v214, %v214
      %v237 = vmul.f32 %v215, %v215
      %v238 = vmul.f32 %v216, %v216
      %v239 = vmul.f32 %v217, %v217
      %v240 = vmul.f32 %v218, %v218
      %v241 = vmul.f32 %v219, %v219
      %v242 = vmul.f32 %v220, %v220
      %v243 = vadd.f32 %v235, %v236
      %v244 = vadd.f32 %v243, %v237
      %v245 = vadd.f32 %v244, %v238
      %v246 = vadd.f32 %v245, %v239
      %v247 = vadd.f32 %v246, %v240
      %v248 = vadd.f32 %v247, %v241
      %v249 = vadd.f32 %v248, %v242
      %250 = vadd.xlane.f32.xlu0 %v249
      %v251 = vpop.xlane.xlu0 %250
      %v252 = vadd.f32 %v234, %v251
      %253 = vst.msk [vmem:[%s3] sm:$0xff] %vm232, %v252
      // Predicated region
      $region29: #{_lambda_.4} parent=23 // pred_check
        %p254 = pneg %p68
      $region30: #{_lambda_.4} parent=23 // pred_check_branch
        %256 = sbr.rel (%p254) target = $region32
      $region31: #{_lambda_.4} parent=23 // pred_region
        _
      $region32: #{_lambda_.4} parent=23 // pred_fallthru
        _
      // Predicated region
      $region33: #{_lambda_.4} parent=23 // pred_check
        %p257 = pneg %p89
      $region34: #{_lambda_.4} parent=23 // pred_check_branch
        %259 = sbr.rel (%p257) target = $region36
      $region35: #{_lambda_.4} parent=23 // pred_region
        _
      $region36: #{_lambda_.4} parent=23 // pred_fallthru
        _
      // Predicated region
      $region37: #{_lambda_.4} parent=23 // pred_check
        %p260 = pneg %p110
      $region38: #{_lambda_.4} parent=23 // pred_check_branch
        %262 = sbr.rel (%p260) target = $region40
      $region39: #{_lambda_.4} parent=23 // pred_region
        _
      $region40: #{_lambda_.4} parent=23 // pred_fallthru
        _
      // Predicated region
      $region41: #{_lambda_.4} parent=23 // pred_check
        %p263 = pneg %p68
      $region42: #{_lambda_.4} parent=23 // pred_check_branch
        %265 = sbr.rel (%p263) target = $region44
      $region43: #{_lambda_.4} parent=23 // pred_region
        _
      $region44: #{_lambda_.4} parent=23 // pred_fallthru
        _
      // Predicated region
      $region45: #{_lambda_.4} parent=23 // pred_check
        %p266 = pneg %p89
      $region46: #{_lambda_.4} parent=23 // pred_check_branch
        %268 = sbr.rel (%p266) target = $region48
      $region47: #{_lambda_.4} parent=23 // pred_region
        _
      $region48: #{_lambda_.4} parent=23 // pred_fallthru
        _
      // Predicated region
      $region49: #{_lambda_.4} parent=23 // pred_check
        %p269 = pneg %p110
      $region50: #{_lambda_.4} parent=23 // pred_check_branch
        %271 = sbr.rel (%p269) target = $region52
      $region51: #{_lambda_.4} parent=23 // pred_region
        _
      $region52: #{_lambda_.4} parent=23 // pred_fallthru
        _
    $region24: #{_lambda_.4} parent=5 // pred_fallthru
      _
    %p272 = scmp.le.s32.totalorder 2, %s10
    // Predicated region
    $region53: #{_lambda_.4} parent=5 // pred_check
      %p273 = pneg %p272
    $region54: #{_lambda_.4} parent=5 // pred_check_branch
      %275 = sbr.rel (%p273) target = $region56
    $region55: #{_lambda_.4} parent=5 // pred_region
      %s276 = ssub.s32 %s10, 2
    $region56: #{_lambda_.4} parent=5 // pred_fallthru
      _
  $region6: #{_lambda_.4} parent=0 // loop_footer
    %s14 = sadd.s32 1, %s10
  $region7: #{_lambda_.4} parent=0 // loop_footer_branch
    %9 = sbr.rel target = $region3
  $region8: #{_lambda_.4} parent=0 // loop_exit
    _

</llo_original>
